<compile_context>
chip_gen: v7x
topology: tpu7x:2x2x1
jax: 0.10.0
libtpu: 0.0.40
codegen_flags: <defaults>
</compile_context>

<pallas_src>
import math

import jax
import jax.numpy as jnp
from jax.experimental import pallas as pl
from jax.experimental.pallas import tpu as pltpu


def _round_up(x, m):
    return ((x + m - 1) // m) * m


# ----------------------------------------------------------------------------
# Kernel: one batch tile per grid step.
#   obs_ref : (TB, obs_dim)
#   act_ref : (TB, act_dim)
#   wo_ref  : (obs_dim, 2*H1)   = [Wo | 0]
#   wa_ref  : (act_dim, 2*H1)   = [0 | Wa]
#   b1_ref  : (1, 2*H1)         = [bo, ba]
#   w2_ref  : (2*H1, H2)
#   b2_ref  : (1, H2)
#   wc_ref  : (1, H2)           final layer weight as a row vector
#   bc_ref  : (1, 1)
#   out_ref : (1, TB)           lane-dense output row (batch on lanes)
# ----------------------------------------------------------------------------
def critic_kernel(obs_ref, act_ref, wo_ref, wa_ref, b1_ref, w2_ref, b2_ref,
                  wc_ref, bc_ref, out_ref):
    # Fused first layer (exact: the zero blocks contribute nothing).
    z1 = (jnp.dot(obs_ref[...], wo_ref[...], preferred_element_type=jnp.float32)
          + jnp.dot(act_ref[...], wa_ref[...], preferred_element_type=jnp.float32)
          + b1_ref[...])
    h1 = jnp.maximum(z1, 0.01 * z1)            # LeakyReLU(0.01)

    # Second layer.
    z2 = jnp.dot(h1, w2_ref[...], preferred_element_type=jnp.float32) + b2_ref[...]
    h2 = jnp.maximum(z2, 0.01 * z2)

    # Final layer: wc (1, H2) contracted against h2 (TB, H2) -> (1, TB),
    # i.e. the result is already lane-dense (batch on lanes) for the store.
    out_ref[...] = (
        jnp.einsum("oh,bh->ob", wc_ref[...], h2,
                   preferred_element_type=jnp.float32)
        + bc_ref[...]
    )


def fuse_params(params):
    """Build the fused/padded parameter set once, outside the kernel."""
    wo, bo = params["wo"], params["bo"]        # (obs_dim, H1), (1, H1)
    wa, ba = params["wa"], params["ba"]        # (act_dim, H1), (1, H1)
    obs_dim, h1 = wo.shape
    act_dim, _ = wa.shape
    wo_pad = jnp.concatenate([wo, jnp.zeros((obs_dim, h1), jnp.float32)], axis=1)
    wa_pad = jnp.concatenate([jnp.zeros((act_dim, h1), jnp.float32), wa], axis=1)
    b1 = jnp.concatenate([bo, ba], axis=1)     # (1, 2*H1)
    return dict(wo=wo_pad, wa=wa_pad, b1=b1,
                w2=params["w2"], b2=params["b2"],
                wc=params["wc"].T,             # (1, H2) row vector
                bc=params["bc"])               # (1, 1)


def critic_forward(obs, action, fused, *, block_b=None):
    """Critic forward pass as one Pallas call, tiled over the (padded) batch."""
    B, obs_dim = obs.shape
    act_dim = action.shape[1]
    h1x2 = fused["wo"].shape[1]
    h2 = fused["w2"].shape[1]

    if block_b is None:
        if B <= 512:
            # Tiny batch: a single resident tile (grid of 1).
            block_b = _round_up(B, 8)
        else:
            # >= 2 tiles so v7x can shard the batch axis across both TCs;
            # cap at 4096 rows to respect v5e's scoped-VMEM headroom.
            block_b = min(4096, _round_up(pl.cdiv(B, 2), 256))

    B_pad = _round_up(B, block_b)
    if block_b < B_pad and block_b % 128 != 0:
        raise ValueError("block_b must be a multiple of 128 when the batch is tiled")
    if B_pad != B:
        obs = jnp.pad(obs, ((0, B_pad - B), (0, 0)))
        action = jnp.pad(action, ((0, B_pad - B), (0, 0)))

    grid = (B_pad // block_b,)
    resident = lambda i: (0, 0)   # weights/biases stay put across batch tiles

    out_row = pl.pallas_call(
        critic_kernel,
        out_shape=jax.ShapeDtypeStruct((1, B_pad), jnp.float32),
        grid=grid,
        in_specs=[
            pl.BlockSpec((block_b, obs_dim), lambda i: (i, 0)),   # obs
            pl.BlockSpec((block_b, act_dim), lambda i: (i, 0)),   # action
            pl.BlockSpec((obs_dim, h1x2), resident),              # Wo_pad
            pl.BlockSpec((act_dim, h1x2), resident),              # Wa_pad
            pl.BlockSpec((1, h1x2), resident),                    # b1
            pl.BlockSpec((h1x2, h2), resident),                   # W2
            pl.BlockSpec((1, h2), resident),                      # b2
            pl.BlockSpec((1, h2), resident),                      # wc (row)
            pl.BlockSpec((1, 1), resident),                       # bc
        ],
        out_specs=pl.BlockSpec((1, block_b), lambda i: (0, i)),
        compiler_params=pltpu.CompilerParams(
            dimension_semantics=("parallel",),
            vmem_limit_bytes=32 * 1024 * 1024),
    )(obs, action, fused["wo"], fused["wa"], fused["b1"],
      fused["w2"], fused["b2"], fused["wc"], fused["bc"])

    return out_row.reshape(B_pad, 1)[:B]


def init_params(key, obs_dim, act_dim, num_units_1, num_units_2):
    """Deterministic init mimicking nn.Linear default + reset_parameters gain."""
    gain = math.sqrt(2.0 / (1.0 + 0.01 ** 2))  # calculate_gain('leaky_relu')

    def linear_init(k, fan_in, fan_out, weight_gain):
        kw, kb = jax.random.split(k)
        bound = 1.0 / math.sqrt(fan_in)
        # stored transposed: (in, out) so forward computes x @ W + b
        w = jax.random.uniform(kw, (fan_in, fan_out), jnp.float32, -bound, bound)
        b = jax.random.uniform(kb, (1, fan_out), jnp.float32, -bound, bound)
        return w * weight_gain, b

    k1, k2, k3, k4 = jax.random.split(key, 4)
    wo, bo = linear_init(k1, obs_dim, num_units_1, gain)
    wa, ba = linear_init(k2, act_dim, num_units_1, gain)
    w2, b2 = linear_init(k3, num_units_1 * 2, num_units_2, gain)
    wc, bc = linear_init(k4, num_units_2, 1, gain)
    return dict(wo=wo, bo=bo, wa=wa, ba=ba, w2=w2, b2=b2, wc=wc, bc=bc)


def critic_ref(obs, action, p):
    """Pure-JAX reference of the PyTorch forward (un-fused params)."""
    lrelu = lambda x: jnp.maximum(x, 0.01 * x)
    x_o = lrelu(obs @ p["wo"] + p["bo"])
    x_a = lrelu(action @ p["wa"] + p["ba"])
    x = lrelu(jnp.concatenate([x_o, x_a], axis=1) @ p["w2"] + p["b2"])
    return x @ p["wc"] + p["bc"]


if __name__ == "__main__":
    # small shapes consistent with the module
    obs_dim = 16        # obs_shape_n
    act_dim = 8         # action_shape_n
    num_units_1 = 32    # args.num_units_1
    num_units_2 = 32    # args.num_units_2

    key = jax.random.PRNGKey(0)
    k_obs, k_act, k_par = jax.random.split(key, 3)
    params = init_params(k_par, obs_dim, act_dim, num_units_1, num_units_2)
    fused = fuse_params(params)

    # Case 1: tiny batch (single grid point, full-extent blocks).
    B = 8
    obs = jax.random.normal(k_obs, (B, obs_dim), jnp.float32)
    action = jax.random.normal(k_act, (B, act_dim), jnp.float32)
    value = jax.block_until_ready(critic_forward(obs, action, fused))
    ref = critic_ref(obs, action, params)
    assert value.shape == (B, 1)
    assert jnp.allclose(value, ref, atol=1e-4, rtol=1e-4)

    # Case 2: ragged batch (exercises wrapper-side padding, single tile).
    B2 = 300
    obs2 = jax.random.normal(jax.random.PRNGKey(1), (B2, obs_dim), jnp.float32)
    act2 = jax.random.normal(jax.random.PRNGKey(2), (B2, act_dim), jnp.float32)
    value2 = jax.block_until_ready(critic_forward(obs2, act2, fused))
    ref2 = critic_ref(obs2, act2, params)
    assert value2.shape == (B2, 1)
    assert jnp.allclose(value2, ref2, atol=1e-4, rtol=1e-4)

    # Case 3: batched path exercising the default heuristic (>=2 batch tiles).
    B3 = 1024
    obs3 = jax.random.normal(jax.random.PRNGKey(3), (B3, obs_dim), jnp.float32)
    act3 = jax.random.normal(jax.random.PRNGKey(4), (B3, act_dim), jnp.float32)
    ref3 = critic_ref(obs3, act3, params)
    value3 = jax.block_until_ready(critic_forward(obs3, act3, fused))
    assert value3.shape == (B3, 1)
    assert jnp.allclose(value3, ref3, atol=1e-4, rtol=1e-4)

    # Case 4: same data with an explicit smaller tile (4 grid steps).
    value4 = jax.block_until_ready(
        critic_forward(obs3, act3, fused, block_b=256))
    assert jnp.allclose(value4, ref3, atol=1e-4, rtol=1e-4)

    print("KERNEL_OK")
</pallas_src>

<mosaic_0001>
module attributes {stable_mosaic.version = 11 : i64} {
  func.func @critic_kernel(%arg0: i32, %arg1: memref<8x16xf32, #tpu.memory_space<vmem>>, %arg2: memref<8x8xf32, #tpu.memory_space<vmem>>, %arg3: memref<16x64xf32, #tpu.memory_space<vmem>>, %arg4: memref<8x64xf32, #tpu.memory_space<vmem>>, %arg5: memref<1x64xf32, #tpu.memory_space<vmem>>, %arg6: memref<64x32xf32, #tpu.memory_space<vmem>>, %arg7: memref<1x32xf32, #tpu.memory_space<vmem>>, %arg8: memref<1x32xf32, #tpu.memory_space<vmem>>, %arg9: memref<1x1xf32, #tpu.memory_space<vmem>>, %arg10: memref<1x8xf32, #tpu.memory_space<vmem>>) attributes {dimension_semantics = [#tpu.dimension_semantics<parallel>], iteration_bounds = array<i64: 1>, scalar_prefetch = 0 : i64, scratch_operands = 0 : i64, tpu.core_type = #tpu.core_type<tc>, window_params = [{transform_indices = @transform_0, window_bounds = array<i64: 8, 16>}, {transform_indices = @transform_1, window_bounds = array<i64: 8, 8>}, {pipeline_mode = #tpu.pipeline_mode<synchronous>, transform_indices = @transform_2, window_bounds = array<i64: 16, 64>}, {pipeline_mode = #tpu.pipeline_mode<synchronous>, transform_indices = @transform_3, window_bounds = array<i64: 8, 64>}, {pipeline_mode = #tpu.pipeline_mode<synchronous>, transform_indices = @transform_4, window_bounds = array<i64: 1, 64>}, {pipeline_mode = #tpu.pipeline_mode<synchronous>, transform_indices = @transform_5, window_bounds = array<i64: 64, 32>}, {pipeline_mode = #tpu.pipeline_mode<synchronous>, transform_indices = @transform_6, window_bounds = array<i64: 1, 32>}, {pipeline_mode = #tpu.pipeline_mode<synchronous>, transform_indices = @transform_7, window_bounds = array<i64: 1, 32>}, {pipeline_mode = #tpu.pipeline_mode<synchronous>, transform_indices = @transform_8, window_bounds = array<i64: 1, 1>}, {transform_indices = @transform_9, window_bounds = array<i64: 1, 8>}]} {
    %c0 = arith.constant 0 : index
    %c0_0 = arith.constant 0 : index
    %0 = vector.load %arg1[%c0, %c0_0] : memref<8x16xf32, #tpu.memory_space<vmem>>, vector<8x16xf32>
    %c0_1 = arith.constant 0 : index
    %c0_2 = arith.constant 0 : index
    %1 = vector.load %arg3[%c0_1, %c0_2] : memref<16x64xf32, #tpu.memory_space<vmem>>, vector<16x64xf32>
    %cst = arith.constant dense<0.000000e+00> : vector<8x64xf32>
    %2 = tpu.matmul %0, %1, %cst {dimension_numbers = #tpu.dot_dimension_numbers<[1], [0], [0], [1], [0, 0, 1, 1], [], []>} : vector<8x16xf32>, vector<16x64xf32>, vector<8x64xf32> -> vector<8x64xf32>
    %c0_3 = arith.constant 0 : index
    %c0_4 = arith.constant 0 : index
    %3 = vector.load %arg2[%c0_3, %c0_4] : memref<8x8xf32, #tpu.memory_space<vmem>>, vector<8x8xf32>
    %c0_5 = arith.constant 0 : index
    %c0_6 = arith.constant 0 : index
    %4 = vector.load %arg4[%c0_5, %c0_6] : memref<8x64xf32, #tpu.memory_space<vmem>>, vector<8x64xf32>
    %cst_7 = arith.constant dense<0.000000e+00> : vector<8x64xf32>
    %5 = tpu.matmul %3, %4, %cst_7 {dimension_numbers = #tpu.dot_dimension_numbers<[1], [0], [0], [1], [0, 0, 1, 1], [], []>} : vector<8x8xf32>, vector<8x64xf32>, vector<8x64xf32> -> vector<8x64xf32>
    %6 = arith.addf %2, %5 : vector<8x64xf32>
    %c0_8 = arith.constant 0 : index
    %c0_9 = arith.constant 0 : index
    %7 = vector.load %arg5[%c0_8, %c0_9] : memref<1x64xf32, #tpu.memory_space<vmem>>, vector<1x64xf32>
    %8 = vector.broadcast %7 : vector<1x64xf32> to vector<8x64xf32>
    %9 = arith.addf %6, %8 : vector<8x64xf32>
    %cst_10 = arith.constant 0.00999999977 : f32
    %10 = vector.broadcast %cst_10 : f32 to vector<8x64xf32>
    %11 = arith.mulf %10, %9 : vector<8x64xf32>
    %12 = arith.maximumf %9, %11 : vector<8x64xf32>
    %c0_11 = arith.constant 0 : index
    %c0_12 = arith.constant 0 : index
    %13 = vector.load %arg6[%c0_11, %c0_12] : memref<64x32xf32, #tpu.memory_space<vmem>>, vector<64x32xf32>
    %cst_13 = arith.constant dense<0.000000e+00> : vector<8x32xf32>
    %14 = tpu.matmul %12, %13, %cst_13 {dimension_numbers = #tpu.dot_dimension_numbers<[1], [0], [0], [1], [0, 0, 1, 1], [], []>} : vector<8x64xf32>, vector<64x32xf32>, vector<8x32xf32> -> vector<8x32xf32>
    %c0_14 = arith.constant 0 : index
    %c0_15 = arith.constant 0 : index
    %15 = vector.load %arg7[%c0_14, %c0_15] : memref<1x32xf32, #tpu.memory_space<vmem>>, vector<1x32xf32>
    %16 = vector.broadcast %15 : vector<1x32xf32> to vector<8x32xf32>
    %17 = arith.addf %14, %16 : vector<8x32xf32>
    %cst_16 = arith.constant 0.00999999977 : f32
    %18 = vector.broadcast %cst_16 : f32 to vector<8x32xf32>
    %19 = arith.mulf %18, %17 : vector<8x32xf32>
    %20 = arith.maximumf %17, %19 : vector<8x32xf32>
    %c0_17 = arith.constant 0 : index
    %c0_18 = arith.constant 0 : index
    %21 = vector.load %arg8[%c0_17, %c0_18] : memref<1x32xf32, #tpu.memory_space<vmem>>, vector<1x32xf32>
    "tpu.trace_start"() <{level = 10 : i32, message = "oh,bh->ob"}> : () -> ()
    %cst_19 = arith.constant dense<0.000000e+00> : vector<1x8xf32>
    %22 = tpu.matmul %21, %20, %cst_19 {dimension_numbers = #tpu.dot_dimension_numbers<[1], [1], [0], [0], [0, 0, 1, 0], [], []>} : vector<1x32xf32>, vector<8x32xf32>, vector<1x8xf32> -> vector<1x8xf32>
    "tpu.trace_stop"() : () -> ()
    %c0_20 = arith.constant 0 : index
    %c0_21 = arith.constant 0 : index
    %23 = vector.load %arg9[%c0_20, %c0_21] : memref<1x1xf32, #tpu.memory_space<vmem>>, vector<1x1xf32>
    %24 = vector.broadcast %23 : vector<1x1xf32> to vector<1x8xf32>
    %25 = arith.addf %22, %24 : vector<1x8xf32>
    %c0_22 = arith.constant 0 : index
    %c0_23 = arith.constant 0 : index
    %26 = vector.load %arg10[%c0_22, %c0_23] : memref<1x8xf32, #tpu.memory_space<vmem>>, vector<1x8xf32>
    tpu.vector_store %arg10[%c0_22, %c0_23], %25 {strides = array<i32>} : memref<1x8xf32, #tpu.memory_space<vmem>>, vector<1x8xf32>,
    return
  }
  func.func @transform_0(%arg0: i32) -> (i32, i32) {
    %c0_i32 = arith.constant 0 : i32
    %c0_i32_0 = arith.constant 0 : i32
    return %arg0, %c0_i32 : i32, i32
  }
  func.func @transform_1(%arg0: i32) -> (i32, i32) {
    %c0_i32 = arith.constant 0 : i32
    %c0_i32_0 = arith.constant 0 : i32
    return %arg0, %c0_i32 : i32, i32
  }
  func.func @transform_2(%arg0: i32) -> (i32, i32) {
    %c0_i32 = arith.constant 0 : i32
    %c0_i32_0 = arith.constant 0 : i32
    %c0_i32_1 = arith.constant 0 : i32
    return %c0_i32, %c0_i32_0 : i32, i32
  }
  func.func @transform_3(%arg0: i32) -> (i32, i32) {
    %c0_i32 = arith.constant 0 : i32
    %c0_i32_0 = arith.constant 0 : i32
    %c0_i32_1 = arith.constant 0 : i32
    return %c0_i32, %c0_i32_0 : i32, i32
  }
  func.func @transform_4(%arg0: i32) -> (i32, i32) {
    %c0_i32 = arith.constant 0 : i32
    %c0_i32_0 = arith.constant 0 : i32
    %c0_i32_1 = arith.constant 0 : i32
    return %c0_i32, %c0_i32_0 : i32, i32
  }
  func.func @transform_5(%arg0: i32) -> (i32, i32) {
    %c0_i32 = arith.constant 0 : i32
    %c0_i32_0 = arith.constant 0 : i32
    %c0_i32_1 = arith.constant 0 : i32
    return %c0_i32, %c0_i32_0 : i32, i32
  }
  func.func @transform_6(%arg0: i32) -> (i32, i32) {
    %c0_i32 = arith.constant 0 : i32
    %c0_i32_0 = arith.constant 0 : i32
    %c0_i32_1 = arith.constant 0 : i32
    return %c0_i32, %c0_i32_0 : i32, i32
  }
  func.func @transform_7(%arg0: i32) -> (i32, i32) {
    %c0_i32 = arith.constant 0 : i32
    %c0_i32_0 = arith.constant 0 : i32
    %c0_i32_1 = arith.constant 0 : i32
    return %c0_i32, %c0_i32_0 : i32, i32
  }
  func.func @transform_8(%arg0: i32) -> (i32, i32) {
    %c0_i32 = arith.constant 0 : i32
    %c0_i32_0 = arith.constant 0 : i32
    %c0_i32_1 = arith.constant 0 : i32
    return %c0_i32, %c0_i32_0 : i32, i32
  }
  func.func @transform_9(%arg0: i32) -> (i32, i32) {
    %c0_i32 = arith.constant 0 : i32
    %c0_i32_0 = arith.constant 0 : i32
    return %c0_i32, %arg0 : i32, i32
  }
}

</mosaic_0001>

<llo_original>
// kernel: tpu_custom_call.1
$region0: #{tpu_custom_call.1}
  #allocation0 [shape = 'u32[]', space=smem, size = 0x4, offset = 0x4, fixed_abs, tag = 'smem constant byte address 0x4 - core index']
  #allocation1 [shape = 'u32[144,128]{1,0:T(1,128)}', space=vmem, size = 0x12000, scoped, tag = 'internal scratch']
  #allocation2 [shape = 'f32[1,1]{1,0:T(1,128)S(1)}', space=vmem, size = 0x200, scoped, tag = 'scoped memory for tpu_custom_call.1']
  %s0 = inlined_call_operand.vmem [shape: f32[8,16], index: 0, kind: input, shape index: {}]
  %s1 = inlined_call_operand.vmem [shape: f32[8,8], index: 1, kind: input, shape index: {}]
  %s2 = inlined_call_operand.vmem [shape: f32[16,64], index: 2, kind: input, shape index: {}]
  %s3 = inlined_call_operand.vmem [shape: f32[8,64], index: 3, kind: input, shape index: {}]
  %s4 = inlined_call_operand.vmem [shape: f32[1,64], index: 4, kind: input, shape index: {}]
  %s5 = inlined_call_operand.vmem [shape: f32[64,32], index: 5, kind: input, shape index: {}]
  %s6 = inlined_call_operand.vmem [shape: f32[1,32], index: 6, kind: input, shape index: {}]
  %s7 = inlined_call_operand.vmem [shape: f32[1,32], index: 7, kind: input, shape index: {}]
  %s8 = inlined_call_operand.<no memory space> [shape: f32[1,1], index: 8, kind: input, shape index: {}]
  %s9 = inlined_call_operand.hbm [shape: f32[1,8], index: 9, kind: output, shape index: {}]
  %s10 = sld [smem:[#allocation0]]
  $region46: #{tpu_custom_call.1} parent=0
    _
  %s12 = ssub.s32 1, %s10
  %s13 = scalar_select 0, %s12, %s10
  %v14 = vstv %s8
  %15 = vst [vmem:[#allocation2] sm:$0x1] %v14
  $region1: #{tpu_custom_call.1} parent=0
    #allocation3 [shape = 'u8[512]{0}', space=vmem, size = 0x400, scoped, tag = 'output window, operand 0, single buffered']
    #allocation4 [shape = 's32[1]{0}', space=sflag, size = 0x4, scoped, tag = 'scoped memory for tpu_custom_call.1']
    %16 = vsyncpa [#allocation4], 0
    // Predicated region
    $region2: #{tpu_custom_call.1} parent=1 // pred_check
      _
    $region3: #{tpu_custom_call.1} parent=1 // pred_check_branch
      %18 = sbr.rel (0) target = $region5
    $region4: #{tpu_custom_call.1} parent=1 // pred_region
      _
    $region5: #{tpu_custom_call.1} parent=1 // pred_fallthru
      _
    // Predicated region
    $region6: #{tpu_custom_call.1} parent=1 // pred_check
      _
    $region7: #{tpu_custom_call.1} parent=1 // pred_check_branch
      %20 = sbr.rel (0) target = $region9
    $region8: #{tpu_custom_call.1} parent=1 // pred_region
      _
    $region9: #{tpu_custom_call.1} parent=1 // pred_fallthru
      _
    // Predicated region
    $region10: #{tpu_custom_call.1} parent=1 // pred_check
      _
    $region11: #{tpu_custom_call.1} parent=1 // pred_check_branch
      %22 = sbr.rel (0) target = $region13
    $region12: #{tpu_custom_call.1} parent=1 // pred_region
      _
    $region13: #{tpu_custom_call.1} parent=1 // pred_fallthru
      _
    // Predicated region
    $region14: #{tpu_custom_call.1} parent=1 // pred_check
      _
    $region15: #{tpu_custom_call.1} parent=1 // pred_check_branch
      %24 = sbr.rel (0) target = $region17
    $region16: #{tpu_custom_call.1} parent=1 // pred_region
      _
    $region17: #{tpu_custom_call.1} parent=1 // pred_fallthru
      _
    // Predicated region
    $region18: #{tpu_custom_call.1} parent=1 // pred_check
      _
    $region19: #{tpu_custom_call.1} parent=1 // pred_check_branch
      %26 = sbr.rel (0) target = $region21
    $region20: #{tpu_custom_call.1} parent=1 // pred_region
      _
    $region21: #{tpu_custom_call.1} parent=1 // pred_fallthru
      _
    // Predicated region
    $region22: #{tpu_custom_call.1} parent=1 // pred_check
      _
    $region23: #{tpu_custom_call.1} parent=1 // pred_check_branch
      %28 = sbr.rel (0) target = $region25
    $region24: #{tpu_custom_call.1} parent=1 // pred_region
      _
    $region25: #{tpu_custom_call.1} parent=1 // pred_fallthru
      _
    // Predicated region
    $region26: #{tpu_custom_call.1} parent=1 // pred_check
      _
    $region27: #{tpu_custom_call.1} parent=1 // pred_check_branch
      %30 = sbr.rel (0) target = $region29
    $region28: #{tpu_custom_call.1} parent=1 // pred_region
      _
    $region29: #{tpu_custom_call.1} parent=1 // pred_fallthru
      _
    // Predicated region
    $region30: #{tpu_custom_call.1} parent=1 // pred_check
      _
    $region31: #{tpu_custom_call.1} parent=1 // pred_check_branch
      %32 = sbr.rel (0) target = $region33
    $region32: #{tpu_custom_call.1} parent=1 // pred_region
      _
    $region33: #{tpu_custom_call.1} parent=1 // pred_fallthru
      _
    // Predicated region
    $region34: #{tpu_custom_call.1} parent=1 // pred_check
      _
    $region35: #{tpu_custom_call.1} parent=1 // pred_check_branch
      %34 = sbr.rel (0) target = $region37
    $region36: #{tpu_custom_call.1} parent=1 // pred_region
      _
    $region37: #{tpu_custom_call.1} parent=1 // pred_fallthru
      _
    %v35 = vld [vmem:[%s0] sm:$0xff]
    %v36 = vld [vmem:[%s2] sm:$0xff]
    %v37 = vld [vmem:[%s2 + $0x8] sm:$0xff]
    %v38 = vld [vmem:[%s1] sm:$0xff]
    %v39 = vld [vmem:[%s3] sm:$0xff]
    %vm40 = vcmask 64512
    %v42 = vsel %vm40, %v38, 0
    %44 = vmatprep.subr.mxu0 0.0
    %45 = vmatpush1.msra.mxu0 %v39
    %46 = vmatprep.subr.mxu0 0.0
    %47 = vmatpush1.msra.mxu0 0.0
    %48 = vmatprep.subr.mxu0 0.0
    %49 = vmatpush1.msra.mxu0 0.0
    %50 = vmatprep.subr.mxu0 0.0
    %51 = vmatpush1.msra.mxu0 0.0
    %52 = vmatprep.subr.mxu0 0.0
    %53 = vmatpush1.msra.mxu0 0.0
    %54 = vmatprep.subr.mxu0 0.0
    %55 = vmatpush1.msra.mxu0 0.0
    %56 = vmatprep.subr.mxu0 0.0
    %57 = vmatpush1.msra.mxu0 0.0
    %58 = vmatprep.subr.mxu0 0.0
    %59 = vmatpush1.msra.mxu0 0.0
    %60 = vmatprep.subr.mxu0 0.0
    %61 = vmatpush1.msra.mxu0 0.0
    %62 = vmatprep.subr.mxu0 0.0
    %63 = vmatpush1.msra.mxu0 0.0
    %64 = vmatprep.subr.mxu0 0.0
    %65 = vmatpush1.msra.mxu0 0.0
    %66 = vmatprep.subr.mxu0 0.0
    %67 = vmatpush1.msra.mxu0 0.0
    %68 = vmatprep.subr.mxu0 0.0
    %69 = vmatpush1.msra.mxu0 0.0
    %70 = vmatprep.subr.mxu0 0.0
    %71 = vmatpush1.msra.mxu0 0.0
    %72 = vmatprep.subr.mxu0 0.0
    %73 = vmatpush1.msra.mxu0 0.0
    %74 = vmatprep.subr.mxu0 0.0
    %75 = vmatpush1.msra.mxu0 0.0
    %76 = vmatprep.subr.mxu0 0.0
    %77 = vmatpush1.msra.mxu0 0.0
    %78 = vmatprep.subr.mxu0 0.0
    %79 = vmatpush1.msra.mxu0 0.0
    %80 = vmatprep.subr.mxu0 0.0
    %81 = vmatpush1.msra.mxu0 0.0
    %82 = vmatprep.subr.mxu0 0.0
    %83 = vmatpush1.msra.mxu0 0.0
    %84 = vmatprep.subr.mxu0 0.0
    %85 = vmatpush1.msra.mxu0 0.0
    %86 = vmatprep.subr.mxu0 0.0
    %87 = vmatpush1.msra.mxu0 0.0
    %88 = vmatprep.subr.mxu0 0.0
    %89 = vmatpush1.msra.mxu0 0.0
    %90 = vmatprep.subr.mxu0 0.0
    %91 = vmatpush1.msra.mxu0 0.0
    %92 = vmatprep.subr.mxu0 0.0
    %93 = vmatpush1.msra.mxu0 0.0
    %94 = vmatprep.subr.mxu0 0.0
    %95 = vmatpush1.msra.mxu0 0.0
    %96 = vmatprep.subr.mxu0 0.0
    %97 = vmatpush1.msra.mxu0 0.0
    %98 = vmatprep.subr.mxu0 0.0
    %99 = vmatpush1.msra.mxu0 0.0
    %100 = vmatprep.subr.mxu0 0.0
    %101 = vmatpush1.msra.mxu0 0.0
    %102 = vmatprep.subr.mxu0 0.0
    %103 = vmatpush1.msra.mxu0 0.0
    %104 = vmatprep.subr.mxu0 0.0
    %105 = vmatpush1.msra.mxu0 0.0
    %106 = vmatprep.subr.mxu0 0.0
    %107 = vmatpush1.msra.mxu0 0.0
    %108 = vmatprep.mubr.f32.mxu0 0.0
    %109 = vmatmul.mubr.f32.gmra.mrb[0].mxu0 %v42
    %v110 = vpop.f32.mrb[0].mxu0
    %v111 = vadd.f32 0.0, %v110
    %v112 = vpop.f32.mrb[0].mxu0
    %113 = vdwg.mxu0
    %vm114 = vcmask 130048
    %v116 = vsel %vm114, %v35, 0
    %118 = vmatprep.subr.mxu0 0.0
    %119 = vmatpush1.msra.mxu0 %v36
    %120 = vmatprep.subr.mxu0 0.0
    %121 = vmatpush1.msra.mxu0 %v37
    %122 = vmatprep.subr.mxu0 0.0
    %123 = vmatpush1.msra.mxu0 0.0
    %124 = vmatprep.subr.mxu0 0.0
    %125 = vmatpush1.msra.mxu0 0.0
    %126 = vmatprep.subr.mxu0 0.0
    %127 = vmatpush1.msra.mxu0 0.0
    %128 = vmatprep.subr.mxu0 0.0
    %129 = vmatpush1.msra.mxu0 0.0
    %130 = vmatprep.subr.mxu0 0.0
    %131 = vmatpush1.msra.mxu0 0.0
    %132 = vmatprep.subr.mxu0 0.0
    %133 = vmatpush1.msra.mxu0 0.0
    %134 = vmatprep.subr.mxu0 0.0
    %135 = vmatpush1.msra.mxu0 0.0
    %136 = vmatprep.subr.mxu0 0.0
    %137 = vmatpush1.msra.mxu0 0.0
    %138 = vmatprep.subr.mxu0 0.0
    %139 = vmatpush1.msra.mxu0 0.0
    %140 = vmatprep.subr.mxu0 0.0
    %141 = vmatpush1.msra.mxu0 0.0
    %142 = vmatprep.subr.mxu0 0.0
    %143 = vmatpush1.msra.mxu0 0.0
    %144 = vmatprep.subr.mxu0 0.0
    %145 = vmatpush1.msra.mxu0 0.0
    %146 = vmatprep.subr.mxu0 0.0
    %147 = vmatpush1.msra.mxu0 0.0
    %148 = vmatprep.subr.mxu0 0.0
    %149 = vmatpush1.msra.mxu0 0.0
    %150 = vmatprep.subr.mxu0 0.0
    %151 = vmatpush1.msra.mxu0 0.0
    %152 = vmatprep.subr.mxu0 0.0
    %153 = vmatpush1.msra.mxu0 0.0
    %154 = vmatprep.subr.mxu0 0.0
    %155 = vmatpush1.msra.mxu0 0.0
    %156 = vmatprep.subr.mxu0 0.0
    %157 = vmatpush1.msra.mxu0 0.0
    %158 = vmatprep.subr.mxu0 0.0
    %159 = vmatpush1.msra.mxu0 0.0
    %160 = vmatprep.subr.mxu0 0.0
    %161 = vmatpush1.msra.mxu0 0.0
    %162 = vmatprep.subr.mxu0 0.0
    %163 = vmatpush1.msra.mxu0 0.0
    %164 = vmatprep.subr.mxu0 0.0
    %165 = vmatpush1.msra.mxu0 0.0
    %166 = vmatprep.subr.mxu0 0.0
    %167 = vmatpush1.msra.mxu0 0.0
    %168 = vmatprep.subr.mxu0 0.0
    %169 = vmatpush1.msra.mxu0 0.0
    %170 = vmatprep.subr.mxu0 0.0
    %171 = vmatpush1.msra.mxu0 0.0
    %172 = vmatprep.subr.mxu0 0.0
    %173 = vmatpush1.msra.mxu0 0.0
    %174 = vmatprep.subr.mxu0 0.0
    %175 = vmatpush1.msra.mxu0 0.0
    %176 = vmatprep.subr.mxu0 0.0
    %177 = vmatpush1.msra.mxu0 0.0
    %178 = vmatprep.subr.mxu0 0.0
    %179 = vmatpush1.msra.mxu0 0.0
    %180 = vmatprep.subr.mxu0 0.0
    %181 = vmatpush1.msra.mxu0 0.0
    %182 = vmatprep.mubr.f32.mxu0 0.0
    %183 = vmatmul.mubr.f32.gmra.mrb[0].mxu0 %v116
    %v184 = vpop.f32.mrb[0].mxu0
    %v185 = vadd.f32 %v111, %v184
    %v186 = vpop.f32.mrb[0].mxu0
    %187 = vdwg.mxu0
    %v188 = vld [vmem:[%s4] sm:$0x1]
    %v190 = vlaneseq
    %v191 = vshrl.u32 %v190, 7
    %v192 = vsub.s32 0, %v191
    %v193 = vrot.slane %v188, %v192
    %v195 = vadd.f32 %v185, %v193
    %v196 = vmul.f32 %v195, 0.01
    %v197 = vmax.f32 %v195, %v196
    %v198 = vld [vmem:[%s5] sm:$0xff]
    %v199 = vld [vmem:[%s5 + $0x8] sm:$0xff]
    %v200 = vld [vmem:[%s5 + $0x10] sm:$0xff]
    %v201 = vld [vmem:[%s5 + $0x18] sm:$0xff]
    %v202 = vld [vmem:[%s5 + $0x20] sm:$0xff]
    %v203 = vld [vmem:[%s5 + $0x28] sm:$0xff]
    %v204 = vld [vmem:[%s5 + $0x30] sm:$0xff]
    %v205 = vld [vmem:[%s5 + $0x38] sm:$0xff]
    %v206 = vld [vmem:[%s6] sm:$0x1]
    %v208 = vlaneseq
    %v209 = vshrl.u32 %v208, 7
    %v210 = vsub.s32 0, %v209
    %v211 = vrot.slane %v206, %v210
    %vm213 = vcmask 523264
    %v215 = vsel %vm213, %v197, 0
    %217 = vmatprep.subr.mxu0 0.0
    %218 = vmatpush1.msra.mxu0 %v198
    %219 = vmatprep.subr.mxu0 0.0
    %220 = vmatpush1.msra.mxu0 %v199
    %221 = vmatprep.subr.mxu0 0.0
    %222 = vmatpush1.msra.mxu0 %v200
    %223 = vmatprep.subr.mxu0 0.0
    %224 = vmatpush1.msra.mxu0 %v201
    %225 = vmatprep.subr.mxu0 0.0
    %226 = vmatpush1.msra.mxu0 %v202
    %227 = vmatprep.subr.mxu0 0.0
    %228 = vmatpush1.msra.mxu0 %v203
    %229 = vmatprep.subr.mxu0 0.0
    %230 = vmatpush1.msra.mxu0 %v204
    %231 = vmatprep.subr.mxu0 0.0
    %232 = vmatpush1.msra.mxu0 %v205
    %233 = vmatprep.subr.mxu0 0.0
    %234 = vmatpush1.msra.mxu0 0.0
    %235 = vmatprep.subr.mxu0 0.0
    %236 = vmatpush1.msra.mxu0 0.0
    %237 = vmatprep.subr.mxu0 0.0
    %238 = vmatpush1.msra.mxu0 0.0
    %239 = vmatprep.subr.mxu0 0.0
    %240 = vmatpush1.msra.mxu0 0.0
    %241 = vmatprep.subr.mxu0 0.0
    %242 = vmatpush1.msra.mxu0 0.0
    %243 = vmatprep.subr.mxu0 0.0
    %244 = vmatpush1.msra.mxu0 0.0
    %245 = vmatprep.subr.mxu0 0.0
    %246 = vmatpush1.msra.mxu0 0.0
    %247 = vmatprep.subr.mxu0 0.0
    %248 = vmatpush1.msra.mxu0 0.0
    %249 = vmatprep.subr.mxu0 0.0
    %250 = vmatpush1.msra.mxu0 0.0
    %251 = vmatprep.subr.mxu0 0.0
    %252 = vmatpush1.msra.mxu0 0.0
    %253 = vmatprep.subr.mxu0 0.0
    %254 = vmatpush1.msra.mxu0 0.0
    %255 = vmatprep.subr.mxu0 0.0
    %256 = vmatpush1.msra.mxu0 0.0
    %257 = vmatprep.subr.mxu0 0.0
    %258 = vmatpush1.msra.mxu0 0.0
    %259 = vmatprep.subr.mxu0 0.0
    %260 = vmatpush1.msra.mxu0 0.0
    %261 = vmatprep.subr.mxu0 0.0
    %262 = vmatpush1.msra.mxu0 0.0
    %263 = vmatprep.subr.mxu0 0.0
    %264 = vmatpush1.msra.mxu0 0.0
    %265 = vmatprep.subr.mxu0 0.0
    %266 = vmatpush1.msra.mxu0 0.0
    %267 = vmatprep.subr.mxu0 0.0
    %268 = vmatpush1.msra.mxu0 0.0
    %269 = vmatprep.subr.mxu0 0.0
    %270 = vmatpush1.msra.mxu0 0.0
    %271 = vmatprep.subr.mxu0 0.0
    %272 = vmatpush1.msra.mxu0 0.0
    %273 = vmatprep.subr.mxu0 0.0
    %274 = vmatpush1.msra.mxu0 0.0
    %275 = vmatprep.subr.mxu0 0.0
    %276 = vmatpush1.msra.mxu0 0.0
    %277 = vmatprep.subr.mxu0 0.0
    %278 = vmatpush1.msra.mxu0 0.0
    %279 = vmatprep.subr.mxu0 0.0
    %280 = vmatpush1.msra.mxu0 0.0
    %281 = vmatprep.mubr.f32.mxu0 0.0
    %282 = vmatmul.mubr.f32.gmra.mrb[0].mxu0 %v215
    %v283 = vpop.f32.mrb[0].mxu0
    %v284 = vadd.f32 %v211, %v283
    %v285 = vpop.f32.mrb[0].mxu0
    %286 = vdwg.mxu0
    %v287 = vmul.f32 %v284, 0.01
    %v288 = vmax.f32 %v284, %v287
    %v289 = vld [vmem:[%s7] sm:$0x1]
    %v290 = vld [vmem:[#allocation2] sm:$0x1]
    %292 = vset.pattern.permute.xlu0 0
    %293 = vperm.xlu0 %292, %v290
    %v294 = vpop.permute.xlu0 %293
    %v296 = vlaneseq
    %v297 = vshrl.u32 %v296, 7
    %v298 = vsub.s32 0, %v297
    %v299 = vrot.slane %v294, %v298
    %vm300 = vcmask 261120
    %v302 = vsel %vm300, %v289, 0
    %v305 = vsel %vm300, %v288, 0
    %307 = vmatprep.subr.mxu0 0.0
    %308 = vmatpush1.xpose.msra.mxu0 %v305
    %309 = vmatprep.subr.mxu0 0.0
    %310 = vmatpush1.xpose.msra.mxu0 0.0
    %311 = vmatprep.subr.mxu0 0.0
    %312 = vmatpush1.xpose.msra.mxu0 0.0
    %313 = vmatprep.subr.mxu0 0.0
    %314 = vmatpush1.xpose.msra.mxu0 0.0
    %315 = vmatprep.subr.mxu0 0.0
    %316 = vmatpush1.xpose.msra.mxu0 0.0
    %317 = vmatprep.subr.mxu0 0.0
    %318 = vmatpush1.xpose.msra.mxu0 0.0
    %319 = vmatprep.subr.mxu0 0.0
    %320 = vmatpush1.xpose.msra.mxu0 0.0
    %321 = vmatprep.subr.mxu0 0.0
    %322 = vmatpush1.xpose.msra.mxu0 0.0
    %323 = vmatprep.subr.mxu0 0.0
    %324 = vmatpush1.xpose.msra.mxu0 0.0
    %325 = vmatprep.subr.mxu0 0.0
    %326 = vmatpush1.xpose.msra.mxu0 0.0
    %327 = vmatprep.subr.mxu0 0.0
    %328 = vmatpush1.xpose.msra.mxu0 0.0
    %329 = vmatprep.subr.mxu0 0.0
    %330 = vmatpush1.xpose.msra.mxu0 0.0
    %331 = vmatprep.subr.mxu0 0.0
    %332 = vmatpush1.xpose.msra.mxu0 0.0
    %333 = vmatprep.subr.mxu0 0.0
    %334 = vmatpush1.xpose.msra.mxu0 0.0
    %335 = vmatprep.subr.mxu0 0.0
    %336 = vmatpush1.xpose.msra.mxu0 0.0
    %337 = vmatprep.subr.mxu0 0.0
    %338 = vmatpush1.xpose.msra.mxu0 0.0
    %339 = vmatprep.subr.mxu0 0.0
    %340 = vmatpush1.xpose.msra.mxu0 0.0
    %341 = vmatprep.subr.mxu0 0.0
    %342 = vmatpush1.xpose.msra.mxu0 0.0
    %343 = vmatprep.subr.mxu0 0.0
    %344 = vmatpush1.xpose.msra.mxu0 0.0
    %345 = vmatprep.subr.mxu0 0.0
    %346 = vmatpush1.xpose.msra.mxu0 0.0
    %347 = vmatprep.subr.mxu0 0.0
    %348 = vmatpush1.xpose.msra.mxu0 0.0
    %349 = vmatprep.subr.mxu0 0.0
    %350 = vmatpush1.xpose.msra.mxu0 0.0
    %351 = vmatprep.subr.mxu0 0.0
    %352 = vmatpush1.xpose.msra.mxu0 0.0
    %353 = vmatprep.subr.mxu0 0.0
    %354 = vmatpush1.xpose.msra.mxu0 0.0
    %355 = vmatprep.subr.mxu0 0.0
    %356 = vmatpush1.xpose.msra.mxu0 0.0
    %357 = vmatprep.subr.mxu0 0.0
    %358 = vmatpush1.xpose.msra.mxu0 0.0
    %359 = vmatprep.subr.mxu0 0.0
    %360 = vmatpush1.xpose.msra.mxu0 0.0
    %361 = vmatprep.subr.mxu0 0.0
    %362 = vmatpush1.xpose.msra.mxu0 0.0
    %363 = vmatprep.subr.mxu0 0.0
    %364 = vmatpush1.xpose.msra.mxu0 0.0
    %365 = vmatprep.subr.mxu0 0.0
    %366 = vmatpush1.xpose.msra.mxu0 0.0
    %367 = vmatprep.subr.mxu0 0.0
    %368 = vmatpush1.xpose.msra.mxu0 0.0
    %369 = vmatprep.subr.mxu0 0.0
    %370 = vmatpush1.xpose.msra.mxu0 0.0
    %371 = vmatprep.mubr.f32.mxu0 0.0
    %372 = vmatmul.mubr.f32.gmra.mrb[0].mxu0 %v302
    %v373 = vpop.f32.mrb[0].mxu0
    %v374 = vadd.f32 %v299, %v373
    %v375 = vpop.f32.mrb[0].mxu0
    %376 = vdwg.mxu0
    %vm377 = vcmask 57344
    %378 = vst.msk [vmem:[#allocation3] sm:$0x1] %vm377, %v374
    // Predicated region
    $region38: #{tpu_custom_call.1} parent=1 // pred_check
      _
    $region39: #{tpu_custom_call.1} parent=1 // pred_check_branch
      %380 = sbr.rel (0) target = $region41
    $region40: #{tpu_custom_call.1} parent=1 // pred_region
      %s382 = ssub.s32 16, 16
      %383 = vsyncadd [#allocation4], %s382
      %s385 = sshll.u32 [#allocation3], 4
      %s386 = int_to_ptr.vmem [resolvable:$true] %s385
      %388 = dma.vmem_to_hbm [thread:$0]  %s386, 16, %s9, [#allocation4]
    $region41: #{tpu_custom_call.1} parent=1 // pred_fallthru
      _
    // Predicated region
    $region42: #{tpu_custom_call.1} parent=1 // pred_check
      _
    $region43: #{tpu_custom_call.1} parent=1 // pred_check_branch
      %390 = sbr.rel (0) target = $region45
    $region44: #{tpu_custom_call.1} parent=1 // pred_region
      %391 = dma.done [#allocation4], 16
    $region45: #{tpu_custom_call.1} parent=1 // pred_fallthru
      _
    %392 = vsyncpa [#allocation4], 1

</llo_original>
